<compile_context>
chip_gen: v7x
topology: tpu7x:2x2x1
jax: 0.10.0
libtpu: 0.0.40
codegen_flags: <defaults>
</compile_context>

<pallas_src>
import functools

import jax
import jax.numpy as jnp
from jax.experimental import pallas as pl
from jax.experimental.pallas import tpu as pltpu


def _focal_loss_kernel(prd_ref, tgt_ref, out_ref, acc_ref, *,
                       gamma, hw_valid, tile_hw, n_rows, needs_mask):
    n = pl.program_id(0)
    j = pl.program_id(1)

    @pl.when((n == 0) & (j == 0))
    def _init():
        acc_ref[...] = jnp.zeros_like(acc_ref)

    x = prd_ref[0].astype(jnp.float32)        # (C, tile_hw)  classes on sublanes
    t = tgt_ref[0].astype(jnp.int32)          # (1, tile_hw)

    # Numerically-stable log-softmax over the class (sublane) axis.
    m = jnp.max(x, axis=0, keepdims=True)                       # (1, tile_hw)
    shifted = x - m
    lse = jnp.log(jnp.sum(jnp.exp(shifted), axis=0, keepdims=True))

    # Gather `shifted` at the target class (avoid materializing full logp_all).
    cls = jax.lax.broadcasted_iota(jnp.int32, x.shape, 0)       # sublane index
    shifted_t = jnp.sum(jnp.where(cls == t, shifted, 0.0),
                        axis=0, keepdims=True)                  # (1, tile_hw)
    logp = shifted_t - lse                                      # (1, tile_hw)

    p = jnp.exp(logp)
    omp = 1.0 - p
    # Static integer gamma -> plain multiply chain on the VPU (gamma=2 -> square),
    # avoiding pow -> exp(gamma*log(x)) on the single EUP pipe.
    if isinstance(gamma, int):
        if gamma == 0:
            focal = jnp.ones_like(omp)
        else:
            focal = omp
            for _ in range(gamma - 1):
                focal = focal * omp
    else:
        focal = omp ** gamma
    loss = focal * logp                                         # (1, tile_hw)

    if needs_mask:
        # Zero out lanes that correspond to padded spatial positions.
        lane = jax.lax.broadcasted_iota(jnp.int32, loss.shape, 1)
        valid = (j * tile_hw + lane) < hw_valid
        loss = jnp.where(valid, loss, 0.0)

    # Per-lane partial sums: a single VPU add per step; the cross-lane XLU
    # reduce happens exactly once, in the final grid step.
    acc_ref[...] += loss

    @pl.when((n == pl.num_programs(0) - 1) & (j == pl.num_programs(1) - 1))
    def _finish():
        total = jnp.sum(acc_ref[...], keepdims=True)            # (1, 1)
        out_ref[...] = -total / jnp.float32(n_rows)


def focal_loss(prd, tgt, gamma=2, max_tile_lanes=4096,
               vmem_budget_bytes=8 * 1024 * 1024):
    """prd: (N, C, H, W) float; tgt: (N, H, W) int. Returns scalar focal loss."""
    N, C, H, W = prd.shape
    HW = H * W
    M = N * HW

    # Free reshapes only -- no transpose, no extra HBM traffic. Keep input dtype
    # (e.g. bf16) through the DMA; the kernel upcasts to f32 internally.
    prd3 = prd.reshape(N, C, HW)
    tgt3 = tgt.reshape(N, 1, HW).astype(jnp.int32)

    # Pick the largest lane tile (multiple of 128) whose double-buffered input
    # footprint stays inside a conservative VMEM budget (safe on v7x's 64 MiB).
    itemsize = jnp.dtype(prd.dtype).itemsize
    cap = max(128, (vmem_budget_bytes // (2 * C * itemsize)) // 128 * 128)
    tile_hw = int(min(cap, max_tile_lanes, pl.cdiv(HW, 128) * 128))

    hw_pad = pl.cdiv(HW, tile_hw) * tile_hw
    needs_mask = hw_pad != HW
    if needs_mask:
        pad = hw_pad - HW
        prd3 = jnp.pad(prd3, ((0, 0), (0, 0), (0, pad)))
        tgt3 = jnp.pad(tgt3, ((0, 0), (0, 0), (0, pad)))

    grid = (N, hw_pad // tile_hw)
    kernel = functools.partial(
        _focal_loss_kernel, gamma=gamma, hw_valid=HW, tile_hw=tile_hw,
        n_rows=M, needs_mask=needs_mask)

    # TODO(synk): on v7x, a per-core partial-sum output (batch axis "parallel",
    # reduce in the wrapper) would use both TensorCores; kept single-accumulator
    # here for portability/robustness (neutral on v5e/v6e).
    out = pl.pallas_call(
        kernel,
        out_shape=jax.ShapeDtypeStruct((1, 1), jnp.float32),
        grid_spec=pltpu.PrefetchScalarGridSpec(
            num_scalar_prefetch=0,
            grid=grid,
            in_specs=[
                pl.BlockSpec((1, C, tile_hw), lambda n, j: (n, 0, j)),
                pl.BlockSpec((1, 1, tile_hw), lambda n, j: (n, 0, j)),
            ],
            out_specs=pl.BlockSpec((1, 1), lambda n, j: (0, 0)),
            scratch_shapes=[pltpu.VMEM((1, tile_hw), jnp.float32)],
        ),
        compiler_params=pltpu.CompilerParams(
            dimension_semantics=("arbitrary", "arbitrary"),
        ),
    )(prd3, tgt3)
    return out[0, 0]


def _focal_loss_ref(prd, tgt, gamma=2):
    N, C, H, W = prd.shape
    x = jnp.transpose(prd.reshape(N, C, H * W), (0, 2, 1)).reshape(-1, C)
    t = tgt.reshape(-1).astype(jnp.int32)
    logp_all = jax.nn.log_softmax(x.astype(jnp.float32), axis=1)
    logp = jnp.take_along_axis(logp_all, t[:, None], axis=1)[:, 0]
    p = jnp.exp(logp)
    loss = (1.0 - p) ** gamma * logp
    return -jnp.mean(loss)


if __name__ == "__main__":
    key = jax.random.PRNGKey(0)
    k1, k2 = jax.random.split(key)
    N, C, H, W = 2, 4, 16, 16
    prd = jax.random.normal(k1, (N, C, H, W), dtype=jnp.float32)
    tgt = jax.random.randint(k2, (N, H, W), 0, C, dtype=jnp.int32)

    out = focal_loss(prd, tgt, gamma=2)
    out = jax.block_until_ready(out)

    ref = _focal_loss_ref(prd, tgt, gamma=2)
    assert jnp.allclose(out, ref, rtol=1e-5, atol=1e-5), (out, ref)
    print("KERNEL_OK")
</pallas_src>

<mosaic_0001>
module attributes {stable_mosaic.version = 11 : i64} {
  func.func @_focal_loss_kernel(%arg0: i32, %arg1: i32, %arg2: memref<1x4x256xf32, #tpu.memory_space<vmem>>, %arg3: memref<1x1x256xi32, #tpu.memory_space<vmem>>, %arg4: memref<1x1xf32, #tpu.memory_space<vmem>>, %arg5: memref<1x256xf32, #tpu.memory_space<vmem>>) attributes {dimension_semantics = [#tpu.dimension_semantics<arbitrary>, #tpu.dimension_semantics<arbitrary>], iteration_bounds = array<i64: 2, 1>, scalar_prefetch = 0 : i64, scratch_operands = 1 : i64, tpu.core_type = #tpu.core_type<tc>, window_params = [{transform_indices = @transform_0, window_bounds = array<i64: 1, 4, 256>}, {transform_indices = @transform_1, window_bounds = array<i64: 1, 1, 256>}, {pipeline_mode = #tpu.pipeline_mode<synchronous>, transform_indices = @transform_2, window_bounds = array<i64: 1, 1>}]} {
    %c0_i32 = arith.constant 0 : i32
    %0 = arith.cmpi eq, %arg0, %c0_i32 : i32
    %c0_i32_0 = arith.constant 0 : i32
    %1 = arith.cmpi eq, %arg1, %c0_i32_0 : i32
    %2 = arith.andi %0, %1 : i1
    %3 = arith.extui %2 : i1 to i32
    %c0_i32_1 = arith.constant 0 : i32
    %4 = arith.cmpi ne, %3, %c0_i32_1 : i32
    scf.if %4 {
      %cst_17 = arith.constant 0.000000e+00 : f32
      %38 = vector.broadcast %cst_17 : f32 to vector<1x256xf32>
      %c0_18 = arith.constant 0 : index
      %c0_19 = arith.constant 0 : index
      %39 = vector.load %arg5[%c0_18, %c0_19] : memref<1x256xf32, #tpu.memory_space<vmem>>, vector<1x256xf32>
      tpu.vector_store %arg5[%c0_18, %c0_19], %38 {strides = array<i32>} : memref<1x256xf32, #tpu.memory_space<vmem>>, vector<1x256xf32>,
    } else {
    }
    %c0 = arith.constant 0 : index
    %c0_2 = arith.constant 0 : index
    %c0_3 = arith.constant 0 : index
    %5 = vector.load %arg2[%c0, %c0_2, %c0_3] : memref<1x4x256xf32, #tpu.memory_space<vmem>>, vector<1x4x256xf32>
    %6 = vector.shape_cast %5 : vector<1x4x256xf32> to vector<4x256xf32>
    %c0_4 = arith.constant 0 : index
    %c0_5 = arith.constant 0 : index
    %c0_6 = arith.constant 0 : index
    %7 = vector.load %arg3[%c0_4, %c0_5, %c0_6] : memref<1x1x256xi32, #tpu.memory_space<vmem>>, vector<1x1x256xi32>
    %8 = vector.shape_cast %7 : vector<1x1x256xi32> to vector<1x256xi32>
    %cst = arith.constant dense<0xFF800000> : vector<256xf32>
    %9 = vector.multi_reduction <maximumf>, %6, %cst [0] : vector<4x256xf32> to vector<256xf32>
    %10 = vector.shape_cast %9 : vector<256xf32> to vector<1x256xf32>
    %11 = vector.broadcast %10 : vector<1x256xf32> to vector<4x256xf32>
    %12 = arith.subf %6, %11 : vector<4x256xf32>
    %13 = math.exp %12 : vector<4x256xf32>
    %cst_7 = arith.constant dense<0.000000e+00> : vector<256xf32>
    %14 = vector.multi_reduction <add>, %13, %cst_7 [0] : vector<4x256xf32> to vector<256xf32>
    %15 = vector.shape_cast %14 : vector<256xf32> to vector<1x256xf32>
    %16 = math.log %15 : vector<1x256xf32>
    %17 = tpu.iota {dimensions = array<i32: 0>} : vector<4x256xi32>
    %18 = vector.broadcast %8 : vector<1x256xi32> to vector<4x256xi32>
    %19 = arith.cmpi eq, %17, %18 : vector<4x256xi32>
    %cst_8 = arith.constant 0.000000e+00 : f32
    %20 = vector.broadcast %cst_8 : f32 to vector<4x256xf32>
    %21 = arith.select %19, %12, %20 : vector<4x256xi1>, vector<4x256xf32>
    %cst_9 = arith.constant dense<0.000000e+00> : vector<256xf32>
    %22 = vector.multi_reduction <add>, %21, %cst_9 [0] : vector<4x256xf32> to vector<256xf32>
    %23 = vector.shape_cast %22 : vector<256xf32> to vector<1x256xf32>
    %24 = arith.subf %23, %16 : vector<1x256xf32>
    %25 = math.exp %24 : vector<1x256xf32>
    %cst_10 = arith.constant 1.000000e+00 : f32
    %26 = vector.broadcast %cst_10 : f32 to vector<1x256xf32>
    %27 = arith.subf %26, %25 : vector<1x256xf32>
    %28 = arith.mulf %27, %27 : vector<1x256xf32>
    %29 = arith.mulf %28, %24 : vector<1x256xf32>
    %c0_11 = arith.constant 0 : index
    %c0_12 = arith.constant 0 : index
    %30 = vector.load %arg5[%c0_11, %c0_12] : memref<1x256xf32, #tpu.memory_space<vmem>>, vector<1x256xf32>
    %31 = arith.addf %30, %29 : vector<1x256xf32>
    %c0_13 = arith.constant 0 : index
    %c0_14 = arith.constant 0 : index
    %32 = vector.load %arg5[%c0_13, %c0_14] : memref<1x256xf32, #tpu.memory_space<vmem>>, vector<1x256xf32>
    tpu.vector_store %arg5[%c0_13, %c0_14], %31 {strides = array<i32>} : memref<1x256xf32, #tpu.memory_space<vmem>>, vector<1x256xf32>,
    %c1_i32 = arith.constant 1 : i32
    %33 = arith.cmpi eq, %arg0, %c1_i32 : i32
    %c0_i32_15 = arith.constant 0 : i32
    %34 = arith.cmpi eq, %arg1, %c0_i32_15 : i32
    %35 = arith.andi %33, %34 : i1
    %36 = arith.extui %35 : i1 to i32
    %c0_i32_16 = arith.constant 0 : i32
    %37 = arith.cmpi ne, %36, %c0_i32_16 : i32
    scf.if %37 {
      %c0_17 = arith.constant 0 : index
      %c0_18 = arith.constant 0 : index
      %38 = vector.load %arg5[%c0_17, %c0_18] : memref<1x256xf32, #tpu.memory_space<vmem>>, vector<1x256xf32>
      %39 = vector.shape_cast %38 : vector<1x256xf32> to vector<1x1x256xf32>
      %cst_19 = arith.constant dense<0.000000e+00> : vector<1xf32>
      %40 = vector.multi_reduction <add>, %39, %cst_19 [1, 2] : vector<1x1x256xf32> to vector<1xf32>
      %41 = vector.shape_cast %40 : vector<1xf32> to vector<1x1x1xf32>
      %42 = vector.extract %41[0, 0, 0] : f32 from vector<1x1x1xf32>
      %43 = vector.broadcast %42 : f32 to vector<1x1xf32>
      %cst_20 = arith.constant 0.000000e+00 : f32
      %44 = vector.broadcast %cst_20 : f32 to vector<1x1xf32>
      %45 = arith.subf %44, %43 : vector<1x1xf32>
      %cst_21 = arith.constant 5.120000e+02 : f32
      %46 = vector.broadcast %cst_21 : f32 to vector<1x1xf32>
      %47 = arith.divf %45, %46 : vector<1x1xf32>
      %c0_22 = arith.constant 0 : index
      %c0_23 = arith.constant 0 : index
      %48 = vector.load %arg4[%c0_22, %c0_23] : memref<1x1xf32, #tpu.memory_space<vmem>>, vector<1x1xf32>
      tpu.vector_store %arg4[%c0_22, %c0_23], %47 {strides = array<i32>} : memref<1x1xf32, #tpu.memory_space<vmem>>, vector<1x1xf32>,
    } else {
    }
    return
  }
  func.func @transform_0(%arg0: i32, %arg1: i32) -> (i32, i32, i32) {
    %c0_i32 = arith.constant 0 : i32
    %c0_i32_0 = arith.constant 0 : i32
    return %arg0, %c0_i32, %arg1 : i32, i32, i32
  }
  func.func @transform_1(%arg0: i32, %arg1: i32) -> (i32, i32, i32) {
    %c0_i32 = arith.constant 0 : i32
    %c0_i32_0 = arith.constant 0 : i32
    return %arg0, %c0_i32, %arg1 : i32, i32, i32
  }
  func.func @transform_2(%arg0: i32, %arg1: i32) -> (i32, i32) {
    %c0_i32 = arith.constant 0 : i32
    %c0_i32_0 = arith.constant 0 : i32
    %c0_i32_1 = arith.constant 0 : i32
    return %c0_i32, %c0_i32_0 : i32, i32
  }
}

</mosaic_0001>

<llo_original>
// kernel: tpu_custom_call.1
$region0: #{tpu_custom_call.1}
  #allocation0 [shape = 'u32[]', space=smem, size = 0x4, offset = 0x4, fixed_abs, tag = 'smem constant byte address 0x4 - core index']
  #allocation1 [shape = 'u32[144,128]{1,0:T(1,128)}', space=vmem, size = 0x12000, scoped, tag = 'internal scratch']
  #allocation2 [shape = 'f32[1,256]{1,0:T(1,128)}', space=vmem, size = 0x400, scoped, tag = 'scratch operand']
  %s0 = inlined_call_operand.hbm [shape: f32[2,4,256], index: 0, kind: input, shape index: {}]
  %s1 = inlined_call_operand.hbm [shape: s32[2,1,256], index: 1, kind: input, shape index: {}]
  %s2 = inlined_call_operand.hbm [shape: f32[1,1], index: 2, kind: output, shape index: {}]
  %s3 = sld [smem:[#allocation0]]
  $region57: #{tpu_custom_call.1} parent=0
    _
  %s5 = ssub.s32 1, %s3
  %s6 = scalar_select 0, %s5, %s3
  $region1: #{tpu_custom_call.1} parent=0
    #allocation3 [shape = 'u8[8192]{0}', space=vmem, size = 0x2000, scoped, tag = 'input window, operand 0']
    #allocation4 [shape = 's32[2]{0}', space=sflag, size = 0x8, scoped, tag = 'scoped memory for tpu_custom_call.1']
    #allocation5 [shape = 's32[2]{0}', space=sflag, size = 0x8, scoped, tag = 'scoped memory for tpu_custom_call.1']
    #allocation6 [shape = 'u8[2048]{0}', space=vmem, size = 0x800, scoped, tag = 'input window, operand 1']
    #allocation7 [shape = 's32[2]{0}', space=sflag, size = 0x8, scoped, tag = 'scoped memory for tpu_custom_call.1']
    #allocation8 [shape = 'u8[512]{0}', space=vmem, size = 0x400, scoped, tag = 'output window, operand 0, single buffered']
    %7 = vsyncpa [#allocation4], 0
    %s8 = scalar_lea.sflag [#allocation4], 1
    %9 = vsyncpa %s8, 0
    %10 = vsyncpa [#allocation7], 0
    %s11 = scalar_lea.sflag [#allocation7], 1
    %12 = vsyncpa %s11, 0
    %13 = vsyncpa [#allocation5], 0
    loop: start=0, step=1, limit=4
    $region2: #{tpu_custom_call.1} parent=1 // loop_pre_header
      _
    $region3: #{tpu_custom_call.1} parent=1 // loop_header
      %s15 = sphi 0, %s19
      %p16 = scmp.ge.s32.totalorder %s15, 4
      %s22 = sphi 0, %s34
      %s23 = sphi 0, %s30
      %s24 = sphi 0, %s22
      %s25 = sphi 0, %s23
      %s26 = sphi 0, %s24
      %s27 = sphi 0, %s25
      %s39 = sphi 0, %s41
      %s42 = sphi 0, %s39
      %s43 = sphi 0, %s42
      %s59 = sphi 0, %s43
      %s67 = sphi 0, %s69
      %s70 = sphi 0, %s67
      %s71 = sphi 0, %s70
      %s87 = sphi 0, %s71
      %s91 = sphi 0, %s91
      %s93 = sphi 0, %s91
      %s94 = sphi 0, %s93
      %s108 = sphi 0, %s94
    $region4: #{tpu_custom_call.1} parent=1 // loop_header_branch
      %18 = sbr.rel (%p16) target = $region8
    $region5: #{tpu_custom_call.1} parent=1 // loop_body
      %s20 = ssub.s32 %s15, 1
      %s21 = ssub.s32 %s15, 2
      %s28 = sadd.s32 1, %s23
      %p29 = scmp.ge.s32.totalorder %s28, 1
      %s30 = scalar_select %p29, 0, %s28
      %s31 = sadd.s32 1, %s22
      %s32 = scalar_select %p29, %s31, %s22
      %p33 = scmp.ge.s32.totalorder %s32, 2
      %s34 = scalar_select %p33, 0, %s32
      %s35 = ssub.s32 %s22, %s34
      %s36 = ssub.s32 %s23, %s30
      %s37 = sor.u32 %s35, %s36
      %p38 = scmp.eq.s32.totalorder %s37, 0
      %s40 = sadd.s32 %s39, 1
      %s41 = scalar_select %p38, %s39, %s40
      %p44 = pneg %p38
      %p45 = scmp.eq.s32.totalorder %s15, 1
      %p46 = por %p44, %p45
      %p47 = scmp.ne.s32.totalorder %s39, %s42
      %p48 = scmp.eq.s32.totalorder %s15, 0
      %p49 = por %p47, %p48
      %p50 = scmp.ne.s32.totalorder %s39, %s42
      %p51 = scmp.eq.s32.totalorder %s20, 1
      %p52 = por %p50, %p51
      %p53 = scmp.ne.s32.totalorder %s42, %s43
      %p54 = scmp.eq.s32.totalorder %s20, 0
      %p55 = por %p53, %p54
      %p56 = scmp.ne.s32.totalorder %s42, %s43
      %p57 = scmp.eq.s32.totalorder %s21, 1
      %p58 = por %p56, %p57
      %p60 = scmp.ne.s32.totalorder %s43, %s59
      %p61 = scmp.eq.s32.totalorder %s21, 0
      %p62 = por %p60, %p61
      %s63 = ssub.s32 %s22, %s34
      %s64 = ssub.s32 %s23, %s30
      %s65 = sor.u32 %s63, %s64
      %p66 = scmp.eq.s32.totalorder %s65, 0
      %s68 = sadd.s32 %s67, 1
      %s69 = scalar_select %p66, %s67, %s68
      %p72 = pneg %p66
      %p73 = scmp.eq.s32.totalorder %s15, 1
      %p74 = por %p72, %p73
      %p75 = scmp.ne.s32.totalorder %s67, %s70
      %p76 = scmp.eq.s32.totalorder %s15, 0
      %p77 = por %p75, %p76
      %p78 = scmp.ne.s32.totalorder %s67, %s70
      %p79 = scmp.eq.s32.totalorder %s20, 1
      %p80 = por %p78, %p79
      %p81 = scmp.ne.s32.totalorder %s70, %s71
      %p82 = scmp.eq.s32.totalorder %s20, 0
      %p83 = por %p81, %p82
      %p84 = scmp.ne.s32.totalorder %s70, %s71
      %p85 = scmp.eq.s32.totalorder %s21, 1
      %p86 = por %p84, %p85
      %p88 = scmp.ne.s32.totalorder %s71, %s87
      %p89 = scmp.eq.s32.totalorder %s21, 0
      %p90 = por %p88, %p89
      %s92 = sadd.s32 %s91, 1
      %p95 = scmp.eq.s32.totalorder %s15, 1
      %p96 = scmp.ne.s32.totalorder %s91, %s93
      %p97 = scmp.eq.s32.totalorder %s15, 0
      %p98 = por %p96, %p97
      %p99 = scmp.ne.s32.totalorder %s91, %s93
      %p100 = scmp.eq.s32.totalorder %s20, 1
      %p101 = por %p99, %p100
      %p102 = scmp.ne.s32.totalorder %s93, %s94
      %p103 = scmp.eq.s32.totalorder %s20, 0
      %p104 = por %p102, %p103
      %p105 = scmp.ne.s32.totalorder %s93, %s94
      %p106 = scmp.eq.s32.totalorder %s21, 1
      %p107 = por %p105, %p106
      %p109 = scmp.ne.s32.totalorder %s94, %s108
      %p110 = scmp.eq.s32.totalorder %s21, 0
      %p111 = por %p109, %p110
      %p112 = scmp.le.s32.totalorder 1, %s15
      %p113 = scmp.lt.s32.totalorder %s15, 3
      %p114 = pnand %p112, %p113
      %p115 = pneg %p114
      // Predicated region
      $region9: #{tpu_custom_call.1} parent=5 // pred_check
        _
      $region10: #{tpu_custom_call.1} parent=5 // pred_check_branch
        %117 = sbr.rel (%p114) target = $region12
      $region11: #{tpu_custom_call.1} parent=5 // pred_region
        %s118 = ssub.s32 %s15, 1
      $region12: #{tpu_custom_call.1} parent=5 // pred_fallthru
        _
      %p119 = scmp.lt.s32.totalorder %s15, 2
      // Predicated region
      $region13: #{tpu_custom_call.1} parent=5 // pred_check
        %p120 = pneg %p119
      $region14: #{tpu_custom_call.1} parent=5 // pred_check_branch
        %122 = sbr.rel (%p120) target = $region16
      $region15: #{tpu_custom_call.1} parent=5 // pred_region
        // Predicated region
        $region17: #{tpu_custom_call.1} parent=15 // pred_check
          %p123 = pneg %p49
        $region18: #{tpu_custom_call.1} parent=15 // pred_check_branch
          %125 = sbr.rel (%p123) target = $region20
        $region19: #{tpu_custom_call.1} parent=15 // pred_region
          %s126 = sand.u32 %s39, 1
          %s127 = scalar_lea.sflag [#allocation4], %s126
          %s128 = sand.u32 %s39, 1
          %s129 = smul.addr %s128, 8
          %s130 = scalar_lea.vmem [#allocation3], %s129
          %s131 = smul.u32 2, %s23
          %s133 = ssub.s32 128, 128
          %134 = vsyncadd %s127, %s133
          %s135 = smul.addr %s22, 2
          %s136 = sadd.s32 %s131, %s135
          %s137 = smul.addr %s136, 64
          %s138 = scalar_lea.hbm %s0, %s137
          %s140 = sshll.u32 %s130, 4
          %s141 = int_to_ptr.vmem [resolvable:$true] %s140
          %143 = dma.hbm_to_vmem [thread:$0]  %s138, 128, %s141, %s127
        $region20: #{tpu_custom_call.1} parent=15 // pred_fallthru
          _
        // Predicated region
        $region21: #{tpu_custom_call.1} parent=15 // pred_check
          %p144 = pneg %p77
        $region22: #{tpu_custom_call.1} parent=15 // pred_check_branch
          %146 = sbr.rel (%p144) target = $region24
        $region23: #{tpu_custom_call.1} parent=15 // pred_region
          %s147 = sand.u32 %s67, 1
          %s148 = scalar_lea.sflag [#allocation7], %s147
          %s149 = sand.u32 %s67, 1
          %s150 = smul.addr %s149, 2
          %s151 = scalar_lea.vmem [#allocation6], %s150
          %s152 = smul.u32 2, %s23
          %s154 = ssub.s32 32, 32
          %155 = vsyncadd %s148, %s154
          %s156 = smul.addr %s22, 2
          %s157 = sadd.s32 %s152, %s156
          %s158 = smul.addr %s157, 16
          %s159 = scalar_lea.hbm %s1, %s158
          %s161 = sshll.u32 %s151, 4
          %s162 = int_to_ptr.vmem [resolvable:$true] %s161
          %164 = dma.hbm_to_vmem [thread:$0]  %s159, 32, %s162, %s148
        $region24: #{tpu_custom_call.1} parent=15 // pred_fallthru
          _
      $region16: #{tpu_custom_call.1} parent=5 // pred_fallthru
        _
      %p165 = scmp.le.s32.totalorder 1, %s15
      %p166 = scmp.lt.s32.totalorder %s15, 3
      %p167 = pnand %p165, %p166
      %p168 = pneg %p167
      // Predicated region
      $region25: #{tpu_custom_call.1} parent=5 // pred_check
        _
      $region26: #{tpu_custom_call.1} parent=5 // pred_check_branch
        %170 = sbr.rel (%p167) target = $region28
      $region27: #{tpu_custom_call.1} parent=5 // pred_region
        %s171 = ssub.s32 %s15, 1
        %s172 = sand.u32 %s42, 1
        %s173 = scalar_lea.sflag [#allocation4], %s172
        %s174 = sand.u32 %s42, 1
        %s175 = smul.addr %s174, 8
        %s176 = scalar_lea.vmem [#allocation3], %s175
        // Predicated region
        $region29: #{tpu_custom_call.1} parent=27 // pred_check
          %p177 = pneg %p55
        $region30: #{tpu_custom_call.1} parent=27 // pred_check_branch
          %179 = sbr.rel (%p177) target = $region32
        $region31: #{tpu_custom_call.1} parent=27 // pred_region
          %180 = dma.done %s173, 128
        $region32: #{tpu_custom_call.1} parent=27 // pred_fallthru
          _
        %s181 = sand.u32 %s70, 1
        %s182 = scalar_lea.sflag [#allocation7], %s181
        %s183 = sand.u32 %s70, 1
        %s184 = smul.addr %s183, 2
        %s185 = scalar_lea.vmem [#allocation6], %s184
        // Predicated region
        $region33: #{tpu_custom_call.1} parent=27 // pred_check
          %p186 = pneg %p83
        $region34: #{tpu_custom_call.1} parent=27 // pred_check_branch
          %188 = sbr.rel (%p186) target = $region36
        $region35: #{tpu_custom_call.1} parent=27 // pred_region
          %189 = dma.done %s182, 32
        $region36: #{tpu_custom_call.1} parent=27 // pred_fallthru
          _
        %s190 = sand.u32 %s42, 1
        %s191 = scalar_lea.sflag [#allocation4], %s190
        %s192 = sand.u32 %s42, 1
        %s193 = smul.addr %s192, 8
        %s194 = scalar_lea.vmem [#allocation3], %s193
        %p195 = pneg %p55
        %p196 = pneg %p52
        %s197 = sand.u32 %s70, 1
        %s198 = scalar_lea.sflag [#allocation7], %s197
        %s199 = sand.u32 %s70, 1
        %s200 = smul.addr %s199, 2
        %s201 = scalar_lea.vmem [#allocation6], %s200
        %p202 = pneg %p83
        %p203 = pneg %p80
        %p204 = pneg %p104
        %p205 = pneg %p101
        %s206 = smul.u32 2, %s25
        %s207 = smul.u32 2, %s25
        %p208 = scmp.eq.s32.totalorder %s24, 0
        %p209 = scmp.eq.s32.totalorder %s25, 0
        %p210 = pnand %p208, %p209
        %p211 = pneg %p210
        // Predicated region
        $region37: #{tpu_custom_call.1} parent=27 // pred_check
          _
        $region38: #{tpu_custom_call.1} parent=27 // pred_check_branch
          %213 = sbr.rel (%p210) target = $region40
        $region39: #{tpu_custom_call.1} parent=27 // pred_region
          %v214 = vlaneseq
          %vm215 = vcmp.ge.s32.totalorder %v214, 0
          %vm216 = vcmp.lt.s32.totalorder %v214, 256
          %vm217 = vmand %vm215, %vm216
          %218 = vst.msk [vmem:[#allocation2] sm:$0x3] %vm217, 0.0
        $region40: #{tpu_custom_call.1} parent=27 // pred_fallthru
          _
        %v219 = vld [vmem:[%s176] sm:$0xff]
        %v220 = vld [vmem:[%s185] sm:$0x3]
        %v222 = vcombine.high %v219, %v219
        %vm224 = vcmask 1043456
        %v225 = vsel %vm224, %v219, -inf
        %v226 = vrot.slane %v225, 4
        %v227 = vmax.f32 %v225, %v226
        %v228 = vrot.slane %v227, 2
        %v229 = vmax.f32 %v227, %v228
        %v230 = vrot.slane %v229, 1
        %v231 = vmax.f32 %v229, %v230
        %v232 = vsel %vm224, %v222, -inf
        %v233 = vrot.slane %v232, 4
        %v234 = vmax.f32 %v232, %v233
        %v235 = vrot.slane %v234, 2
        %v236 = vmax.f32 %v234, %v235
        %v237 = vrot.slane %v236, 1
        %v238 = vmax.f32 %v236, %v237
        %v241 = vcombine.low %v231, %v238
        %v243 = vsub.f32 %v219, %v241
        %v244 = vmul.f32 %v243, 1.442695
        %v245 = vpow.pop %v244
        %v247 = vcombine.high %v245, %v245
        %v249 = vsel %vm224, %v245, 0.0
        %v250 = vrot.slane %v249, 4
        %v251 = vadd.f32 %v249, %v250
        %v252 = vrot.slane %v251, 2
        %v253 = vadd.f32 %v251, %v252
        %v254 = vrot.slane %v253, 1
        %v255 = vadd.f32 %v253, %v254
        %v256 = vsel %vm224, %v247, 0.0
        %v257 = vrot.slane %v256, 4
        %v258 = vadd.f32 %v256, %v257
        %v259 = vrot.slane %v258, 2
        %v260 = vadd.f32 %v258, %v259
        %v261 = vrot.slane %v260, 1
        %v262 = vadd.f32 %v260, %v261
        %v263 = vlog2.pop %v255
        %v264 = vmul.f32 %v263, 0.6931472
        %v265 = vlog2.pop %v262
        %v266 = vmul.f32 %v265, 0.6931472
        %v267 = vlaneseq
        %v268 = vshrl.u32 %v267, 7
        %v269 = vlaneseq
        %v270 = vshrl.u32 %v269, 7
        %v271 = vsub.s32 0, %v270
        %v272 = vrot.slane %v220, %v271
        %v273 = vlaneseq
        %v274 = vshrl.u32 %v273, 7
        %v275 = vsub.s32 1, %v274
        %v276 = vrot.slane %v220, %v275
        %vm277 = vcmp.eq.s32.totalorder %v268, %v272
        %vm278 = vcmp.eq.s32.totalorder %v268, %v276
        %v280 = vcombine.high %v243, %v243
        %v282 = vsel %vm277, %v243, 0.0
        %v283 = vsel %vm278, %v280, 0.0
        %v284 = vsel %vm224, %v282, 0.0
        %v285 = vrot.slane %v284, 4
        %v286 = vadd.f32 %v284, %v285
        %v287 = vrot.slane %v286, 2
        %v288 = vadd.f32 %v286, %v287
        %v289 = vrot.slane %v288, 1
        %v290 = vadd.f32 %v288, %v289
        %v291 = vsel %vm224, %v283, 0.0
        %v292 = vrot.slane %v291, 4
        %v293 = vadd.f32 %v291, %v292
        %v294 = vrot.slane %v293, 2
        %v295 = vadd.f32 %v293, %v294
        %v296 = vrot.slane %v295, 1
        %v297 = vadd.f32 %v295, %v296
        %v298 = vsub.f32 %v290, %v264
        %v299 = vsub.f32 %v297, %v266
        %v300 = vmul.f32 %v298, 1.442695
        %v301 = vpow.pop %v300
        %v302 = vmul.f32 %v299, 1.442695
        %v303 = vpow.pop %v302
        %v304 = vsub.f32 1.0, %v301
        %v305 = vsub.f32 1.0, %v303
        %v306 = vmul.f32 %v304, %v304
        %v307 = vmul.f32 %v305, %v305
        %v308 = vmul.f32 %v306, %v298
        %v309 = vmul.f32 %v307, %v299
        %v310 = vld [vmem:[#allocation2] sm:$0x3]
        %v313 = vcombine.low %v308, %v309
        %v315 = vunpack.c.l.s4 1966171168
        %v316 = vunpack.c.0.s8 %v315
        %v317 = vlaneseq
        %v318 = vshrl.u32 %v317, 7
        %v319 = vsub.s32 %v316, %v318
        %v320 = vrot.slane %v313, %v319
        %v322 = vunpack.c.l.s4 1966171168
        %v323 = vunpack.c.0.s8 %v322
        %v324 = vlaneseq
        %v325 = vshrl.u32 %v324, 7
        %v326 = vsub.s32 %v323, %v325
        %v327 = vrot.slane %v320, %v326
        %v329 = vadd.f32 %v310, %v327
        %v330 = vlaneseq
        %vm331 = vcmp.ge.s32.totalorder %v330, 0
        %vm332 = vcmp.lt.s32.totalorder %v330, 256
        %vm333 = vmand %vm331, %vm332
        %334 = vst.msk [vmem:[#allocation2] sm:$0x3] %vm333, %v329
        %p335 = scmp.eq.s32.totalorder %s24, 1
        %p336 = pnand %p335, %p209
        %p337 = pneg %p336
        // Predicated region
        $region41: #{tpu_custom_call.1} parent=27 // pred_check
          _
        $region42: #{tpu_custom_call.1} parent=27 // pred_check_branch
          %339 = sbr.rel (%p336) target = $region44
        $region43: #{tpu_custom_call.1} parent=27 // pred_region
          %v340 = vld [vmem:[#allocation2] sm:$0x3]
          %v342 = vlaneseq
          %v343 = vshrl.u32 %v342, 7
          %v344 = vsub.s32 0, %v343
          %v345 = vrot.slane %v340, %v344
          %v346 = vlaneseq
          %v347 = vshrl.u32 %v346, 7
          %v348 = vsub.s32 1, %v347
          %v349 = vrot.slane %v340, %v348
          %vm352 = vcmask 1040384
          %v353 = vsel %vm352, %v345, 0.0
          %v354 = vsel %vm352, %v349, 0.0
          %v355 = vadd.f32 %v353, %v354
          %356 = vadd.xlane.f32.xlu0 %v355
          %v357 = vpop.xlane.xlu0 %356
          %v358 = vrot.slane %v357, 4
          %v359 = vadd.f32 %v357, %v358
          %v360 = vrot.slane %v359, 2
          %v361 = vadd.f32 %v359, %v360
          %v362 = vrot.slane %v361, 1
          %v363 = vadd.f32 %v361, %v362
          %s364 = vtos %v363
          %v365 = vstv %s364
          %v366 = vsub.f32 0.0, %v365
          %v367 = vrcp.pop 512.0
          %v368 = vmul.f32 %v366, %v367
          %vm369 = vcmask 0
          %370 = vst.msk [vmem:[#allocation8] sm:$0x1] %vm369, %v368
        $region44: #{tpu_custom_call.1} parent=27 // pred_fallthru
          _
        // Predicated region
        $region45: #{tpu_custom_call.1} parent=27 // pred_check
          %p371 = pneg %p101
        $region46: #{tpu_custom_call.1} parent=27 // pred_check_branch
          %373 = sbr.rel (%p371) target = $region48
        $region47: #{tpu_custom_call.1} parent=27 // pred_region
          %s375 = ssub.s32 16, 16
          %376 = vsyncadd [#allocation5], %s375
          %s378 = sshll.u32 [#allocation8], 4
          %s379 = int_to_ptr.vmem [resolvable:$true] %s378
          %381 = dma.vmem_to_hbm [thread:$0]  %s379, 16, %s2, [#allocation5]
        $region48: #{tpu_custom_call.1} parent=27 // pred_fallthru
          _
        // Predicated region
        $region49: #{tpu_custom_call.1} parent=27 // pred_check
          %p382 = pneg %p101
        $region50: #{tpu_custom_call.1} parent=27 // pred_check_branch
          %384 = sbr.rel (%p382) target = $region52
        $region51: #{tpu_custom_call.1} parent=27 // pred_region
          %385 = dma.done [#allocation5], 16
        $region52: #{tpu_custom_call.1} parent=27 // pred_fallthru
          _
      $region28: #{tpu_custom_call.1} parent=5 // pred_fallthru
        _
      %p386 = scmp.le.s32.totalorder 2, %s15
      // Predicated region
      $region53: #{tpu_custom_call.1} parent=5 // pred_check
        %p387 = pneg %p386
      $region54: #{tpu_custom_call.1} parent=5 // pred_check_branch
        %389 = sbr.rel (%p387) target = $region56
      $region55: #{tpu_custom_call.1} parent=5 // pred_region
        %s390 = ssub.s32 %s15, 2
      $region56: #{tpu_custom_call.1} parent=5 // pred_fallthru
        _
    $region6: #{tpu_custom_call.1} parent=1 // loop_footer
      %s19 = sadd.s32 1, %s15
    $region7: #{tpu_custom_call.1} parent=1 // loop_footer_branch
      %14 = sbr.rel target = $region3
    $region8: #{tpu_custom_call.1} parent=1 // loop_exit
      _
    %391 = vsyncpa [#allocation4], 1
    %s392 = scalar_lea.sflag [#allocation4], 1
    %393 = vsyncpa %s392, 1
    %394 = vsyncpa [#allocation7], 1
    %s395 = scalar_lea.sflag [#allocation7], 1
    %396 = vsyncpa %s395, 1
    %397 = vsyncpa [#allocation5], 1
    %s398 = scalar_lea.sflag [#allocation5], 1
    %399 = vsyncpa %s398, 1

</llo_original>
